<compile_context>
chip_gen: v7x
topology: tpu7x:2x2x1
jax: 0.10.0
libtpu: 0.0.40
codegen_flags: <defaults>
</compile_context>

<pallas_src>
import functools

import jax
import jax.numpy as jnp
from jax.experimental import pallas as pl
from jax.experimental.pallas import tpu as pltpu


def _sigmoid_one_push(x):
    # Exactly one EUP transcendental per element: sigmoid(x) = 0.5*tanh(0.5*x) + 0.5
    return 0.5 * jnp.tanh(0.5 * x) + 0.5


def _lstm_fc_kernel(x_ref, wih_ref, b_ref, wfc_ref, bfc_ref, out_ref):
    # Cast the x tile to the matmul dtype *inside* the kernel (no extra wrapper pass).
    x = x_ref[...].astype(wih_ref.dtype)

    # gates = x @ W_ih^T (columns reordered to [i, o, g], forget gate dropped;
    #         h0 = 0 => no W_hh contribution) + (b_ih + b_hh), f32 accumulation.
    gates = jnp.dot(x, wih_ref[...], preferred_element_type=jnp.float32) + b_ref[...]
    H = gates.shape[1] // 3

    # Two contiguous EUP pushes: one tanh-form sigmoid over [i | o], one tanh over [g].
    io = _sigmoid_one_push(gates[:, :2 * H])
    g_g = jnp.tanh(gates[:, 2 * H:])
    i_g = io[:, :H]
    o_g = io[:, H:]

    c1 = i_g * g_g                      # f_g * c0 == 0 exactly (c0 = 0)
    h1 = o_g * jnp.tanh(c1)

    # logits = h1 @ W_fc^T + b_fc   -- narrow (tb, out_feat) store, no lane padding.
    out_ref[...] = (jnp.dot(h1.astype(wfc_ref.dtype), wfc_ref[...],
                            preferred_element_type=jnp.float32) + bfc_ref[...])


@functools.partial(jax.jit,
                   static_argnames=("num_labels", "output_dim",
                                    "block_b", "compute_dtype"))
def lstm_classifier_forward(x, w_ih, b_ih, b_hh, w_fc, b_fc,
                            num_labels, output_dim, *,
                            block_b=2048, compute_dtype=jnp.bfloat16):
    """Forward pass matching the PyTorch LSTMClassifier.

    x    : (B, input_dim)                     f32 (fed to the kernel unmodified)
    w_ih : (4*hidden, input_dim)              torch lstm.weight_ih_l0, gates [i, f, g, o]
    b_ih : (4*hidden,)                        torch lstm.bias_ih_l0
    b_hh : (4*hidden,)                        torch lstm.bias_hh_l0
    w_fc : (num_labels*output_dim, hidden)    torch fc.weight
    b_fc : (num_labels*output_dim,)           torch fc.bias
    """
    B, input_dim = x.shape
    hidden = w_ih.shape[0] // 4
    out_feat = num_labels * output_dim

    # ---- one-off host-side parameter prep (tiny arrays) ----------------------
    # Drop the dead forget gate, reorder to [i, o, g], fold the two biases.
    w_i, _, w_g, w_o = jnp.split(w_ih, 4, axis=0)
    b_i, _, b_g, b_o = jnp.split(b_ih + b_hh, 4)
    w_iog_t = jnp.concatenate([w_i, w_o, w_g], axis=0).T.astype(compute_dtype)  # (in, 3H)
    bias = jnp.concatenate([b_i, b_g * 0 + b_g, b_o * 0 + b_o])                 # placeholder (rebuilt below)
    bias = jnp.concatenate([b_i, b_o, b_g]).astype(jnp.float32).reshape(1, 3 * hidden)
    w_fc_t = w_fc.T.astype(compute_dtype)                                       # (hidden, out_feat)
    b_fc_r = b_fc.astype(jnp.float32).reshape(1, out_feat)

    # ---- batch tiling ---------------------------------------------------------
    # Single full-extent block if it fits; otherwise sublane-multiple tiles with
    # the (possibly ragged) last tile handled by Pallas' masked block store.
    if B <= block_b:
        tb = B
    else:
        tb = max((block_b // 8) * 8, 8)
    grid = (pl.cdiv(B, tb),)

    itemsize = jnp.dtype(compute_dtype).itemsize

    # Explicit scoped-VMEM budget: double-buffered x/out tiles + weights +
    # generous margin for the (tb, 3H) gates and activation temporaries.
    vmem_limit = int(2 * tb * input_dim * x.dtype.itemsize
                     + 2 * tb * out_feat * 4
                     + 8 * tb * 3 * hidden * 4
                     + 2 * (w_iog_t.size + w_fc_t.size) * itemsize
                     + (bias.size + b_fc_r.size) * 4
                     + (4 << 20))
    vmem_limit = min(max(vmem_limit, 32 << 20), 60 << 20)   # <= v7x 64 MiB physical

    cost = pl.CostEstimate(
        flops=2 * B * input_dim * 3 * hidden + 2 * B * hidden * out_feat,
        transcendentals=4 * B * hidden,        # tanh(2H) + tanh(H) + tanh(H) per row
        bytes_accessed=(B * input_dim * x.dtype.itemsize
                        + (w_iog_t.size + w_fc_t.size) * itemsize
                        + (bias.size + b_fc_r.size) * 4
                        + B * out_feat * 4))

    logits = pl.pallas_call(
        _lstm_fc_kernel,
        out_shape=jax.ShapeDtypeStruct((B, out_feat), jnp.float32),
        grid=grid,
        in_specs=[
            pl.BlockSpec((tb, input_dim), lambda i: (i, 0)),    # x: tiled over batch
            pl.BlockSpec(w_iog_t.shape, lambda i: (0, 0)),      # weights: VMEM-resident
            pl.BlockSpec(bias.shape, lambda i: (0, 0)),
            pl.BlockSpec(w_fc_t.shape, lambda i: (0, 0)),
            pl.BlockSpec(b_fc_r.shape, lambda i: (0, 0)),
        ],
        out_specs=pl.BlockSpec((tb, out_feat), lambda i: (i, 0)),
        compiler_params=pltpu.CompilerParams(
            dimension_semantics=("parallel",),   # shards the batch grid across TCs on v7x
            vmem_limit_bytes=vmem_limit),
        cost_estimate=cost,
    )(x, w_iog_t, bias, w_fc_t, b_fc_r)

    return logits.reshape(B, num_labels, output_dim)


def _ref_forward(x, w_ih, w_hh, b_ih, b_hh, w_fc, b_fc, num_labels, output_dim):
    """Pure-JAX reference: full torch LSTM cell math (h0 = c0 = 0) + Linear."""
    hidden = w_ih.shape[0] // 4
    h0 = jnp.zeros((x.shape[0], hidden), jnp.float32)
    c0 = jnp.zeros_like(h0)
    gates = x @ w_ih.T + h0 @ w_hh.T + b_ih + b_hh
    i, f, g, o = jnp.split(gates, 4, axis=1)
    i, f, g, o = jax.nn.sigmoid(i), jax.nn.sigmoid(f), jnp.tanh(g), jax.nn.sigmoid(o)
    c1 = f * c0 + i * g
    h1 = o * jnp.tanh(c1)
    return (h1 @ w_fc.T + b_fc).reshape(-1, num_labels, output_dim)


if __name__ == "__main__":
    # Shapes consistent with the module spec (hidden_dim = 128), kept small.
    B = 16
    input_dim = 64
    hidden_dim = 128
    num_labels = 4
    output_dim = 3
    out_feat = num_labels * output_dim

    key = jax.random.PRNGKey(0)
    k_x, k_x2, k_wih, k_whh, k_bih, k_bhh, k_wfc, k_bfc = jax.random.split(key, 8)

    x = jax.random.normal(k_x, (B, input_dim), dtype=jnp.float32)
    w_ih = jax.random.normal(k_wih, (4 * hidden_dim, input_dim), jnp.float32) * 0.1
    w_hh = jax.random.normal(k_whh, (4 * hidden_dim, hidden_dim), jnp.float32) * 0.1
    b_ih = jax.random.normal(k_bih, (4 * hidden_dim,), jnp.float32) * 0.1
    b_hh = jax.random.normal(k_bhh, (4 * hidden_dim,), jnp.float32) * 0.1
    w_fc = jax.random.normal(k_wfc, (out_feat, hidden_dim), jnp.float32) * 0.1
    b_fc = jax.random.normal(k_bfc, (out_feat,), jnp.float32) * 0.1

    # ---- f32 exact path, single full-extent tile (grid=(1,)) -----------------
    ref = _ref_forward(x, w_ih, w_hh, b_ih, b_hh, w_fc, b_fc, num_labels, output_dim)
    logits = lstm_classifier_forward(
        x, w_ih, b_ih, b_hh, w_fc, b_fc, num_labels, output_dim,
        compute_dtype=jnp.float32)
    logits = jax.block_until_ready(logits)
    assert logits.shape == (B, num_labels, output_dim)
    assert jnp.allclose(logits, ref, atol=1e-4, rtol=1e-4)

    # ---- default bf16 path, tiled + ragged last batch tile -------------------
    # B2=20 with block_b=8 -> grid=(3,), last tile has only 4 real rows
    # (exercises the masked-store path that replaced wrapper batch padding).
    B2 = 20
    x2 = jax.random.normal(k_x2, (B2, input_dim), dtype=jnp.float32)
    ref2 = _ref_forward(x2, w_ih, w_hh, b_ih, b_hh, w_fc, b_fc, num_labels, output_dim)
    logits2 = lstm_classifier_forward(
        x2, w_ih, b_ih, b_hh, w_fc, b_fc, num_labels, output_dim,
        block_b=8)  # compute_dtype defaults to bf16 (f32 accumulation / activations)
    logits2 = jax.block_until_ready(logits2)
    assert logits2.shape == (B2, num_labels, output_dim)
    assert jnp.allclose(logits2, ref2, atol=5e-2, rtol=5e-2)

    print("KERNEL_OK")
</pallas_src>

<mosaic_0001>
module attributes {stable_mosaic.version = 11 : i64} {
  func.func @_lstm_fc_kernel(%arg0: i32, %arg1: memref<16x64xf32, #tpu.memory_space<vmem>>, %arg2: memref<64x384xf32, #tpu.memory_space<vmem>>, %arg3: memref<1x384xf32, #tpu.memory_space<vmem>>, %arg4: memref<128x12xf32, #tpu.memory_space<vmem>>, %arg5: memref<1x12xf32, #tpu.memory_space<vmem>>, %arg6: memref<16x12xf32, #tpu.memory_space<vmem>>) attributes {dimension_semantics = [#tpu.dimension_semantics<parallel>], iteration_bounds = array<i64: 1>, scalar_prefetch = 0 : i64, scratch_operands = 0 : i64, tpu.core_type = #tpu.core_type<tc>, window_params = [{transform_indices = @transform_0, window_bounds = array<i64: 16, 64>}, {pipeline_mode = #tpu.pipeline_mode<synchronous>, transform_indices = @transform_1, window_bounds = array<i64: 64, 384>}, {pipeline_mode = #tpu.pipeline_mode<synchronous>, transform_indices = @transform_2, window_bounds = array<i64: 1, 384>}, {pipeline_mode = #tpu.pipeline_mode<synchronous>, transform_indices = @transform_3, window_bounds = array<i64: 128, 12>}, {pipeline_mode = #tpu.pipeline_mode<synchronous>, transform_indices = @transform_4, window_bounds = array<i64: 1, 12>}, {transform_indices = @transform_5, window_bounds = array<i64: 16, 12>}]} {
    %c0 = arith.constant 0 : index
    %c0_0 = arith.constant 0 : index
    %0 = vector.load %arg1[%c0, %c0_0] : memref<16x64xf32, #tpu.memory_space<vmem>>, vector<16x64xf32>
    %c0_1 = arith.constant 0 : index
    %c0_2 = arith.constant 0 : index
    %1 = vector.load %arg2[%c0_1, %c0_2] : memref<64x384xf32, #tpu.memory_space<vmem>>, vector<64x384xf32>
    %cst = arith.constant dense<0.000000e+00> : vector<16x384xf32>
    %2 = tpu.matmul %0, %1, %cst {dimension_numbers = #tpu.dot_dimension_numbers<[1], [0], [0], [1], [0, 0, 1, 1], [], []>} : vector<16x64xf32>, vector<64x384xf32>, vector<16x384xf32> -> vector<16x384xf32>
    %c0_3 = arith.constant 0 : index
    %c0_4 = arith.constant 0 : index
    %3 = vector.load %arg3[%c0_3, %c0_4] : memref<1x384xf32, #tpu.memory_space<vmem>>, vector<1x384xf32>
    %4 = vector.broadcast %3 : vector<1x384xf32> to vector<16x384xf32>
    %5 = arith.addf %2, %4 : vector<16x384xf32>
    %6 = vector.extract_strided_slice %5 {offsets = [0, 0], sizes = [16, 256], strides = [1, 1]} : vector<16x384xf32> to vector<16x256xf32>
    %cst_5 = arith.constant 5.000000e-01 : f32
    %7 = vector.broadcast %cst_5 : f32 to vector<16x256xf32>
    %8 = arith.mulf %7, %6 : vector<16x256xf32>
    %9 = math.tanh %8 : vector<16x256xf32>
    %cst_6 = arith.constant 5.000000e-01 : f32
    %10 = vector.broadcast %cst_6 : f32 to vector<16x256xf32>
    %11 = arith.mulf %10, %9 : vector<16x256xf32>
    %cst_7 = arith.constant 5.000000e-01 : f32
    %12 = vector.broadcast %cst_7 : f32 to vector<16x256xf32>
    %13 = arith.addf %11, %12 : vector<16x256xf32>
    %14 = vector.extract_strided_slice %5 {offsets = [0, 256], sizes = [16, 128], strides = [1, 1]} : vector<16x384xf32> to vector<16x128xf32>
    %15 = math.tanh %14 : vector<16x128xf32>
    %16 = vector.extract_strided_slice %13 {offsets = [0, 0], sizes = [16, 128], strides = [1, 1]} : vector<16x256xf32> to vector<16x128xf32>
    %17 = vector.extract_strided_slice %13 {offsets = [0, 128], sizes = [16, 128], strides = [1, 1]} : vector<16x256xf32> to vector<16x128xf32>
    %18 = arith.mulf %16, %15 : vector<16x128xf32>
    %19 = math.tanh %18 : vector<16x128xf32>
    %20 = arith.mulf %17, %19 : vector<16x128xf32>
    %c0_8 = arith.constant 0 : index
    %c0_9 = arith.constant 0 : index
    %21 = vector.load %arg4[%c0_8, %c0_9] : memref<128x12xf32, #tpu.memory_space<vmem>>, vector<128x12xf32>
    %cst_10 = arith.constant dense<0.000000e+00> : vector<16x12xf32>
    %22 = tpu.matmul %20, %21, %cst_10 {dimension_numbers = #tpu.dot_dimension_numbers<[1], [0], [0], [1], [0, 0, 1, 1], [], []>} : vector<16x128xf32>, vector<128x12xf32>, vector<16x12xf32> -> vector<16x12xf32>
    %c0_11 = arith.constant 0 : index
    %c0_12 = arith.constant 0 : index
    %23 = vector.load %arg5[%c0_11, %c0_12] : memref<1x12xf32, #tpu.memory_space<vmem>>, vector<1x12xf32>
    %24 = vector.broadcast %23 : vector<1x12xf32> to vector<16x12xf32>
    %25 = arith.addf %22, %24 : vector<16x12xf32>
    %c0_13 = arith.constant 0 : index
    %c0_14 = arith.constant 0 : index
    %26 = vector.load %arg6[%c0_13, %c0_14] : memref<16x12xf32, #tpu.memory_space<vmem>>, vector<16x12xf32>
    tpu.vector_store %arg6[%c0_13, %c0_14], %25 {strides = array<i32>} : memref<16x12xf32, #tpu.memory_space<vmem>>, vector<16x12xf32>,
    return
  }
  func.func @transform_0(%arg0: i32) -> (i32, i32) {
    %c0_i32 = arith.constant 0 : i32
    %c0_i32_0 = arith.constant 0 : i32
    return %arg0, %c0_i32 : i32, i32
  }
  func.func @transform_1(%arg0: i32) -> (i32, i32) {
    %c0_i32 = arith.constant 0 : i32
    %c0_i32_0 = arith.constant 0 : i32
    %c0_i32_1 = arith.constant 0 : i32
    return %c0_i32, %c0_i32_0 : i32, i32
  }
  func.func @transform_2(%arg0: i32) -> (i32, i32) {
    %c0_i32 = arith.constant 0 : i32
    %c0_i32_0 = arith.constant 0 : i32
    %c0_i32_1 = arith.constant 0 : i32
    return %c0_i32, %c0_i32_0 : i32, i32
  }
  func.func @transform_3(%arg0: i32) -> (i32, i32) {
    %c0_i32 = arith.constant 0 : i32
    %c0_i32_0 = arith.constant 0 : i32
    %c0_i32_1 = arith.constant 0 : i32
    return %c0_i32, %c0_i32_0 : i32, i32
  }
  func.func @transform_4(%arg0: i32) -> (i32, i32) {
    %c0_i32 = arith.constant 0 : i32
    %c0_i32_0 = arith.constant 0 : i32
    %c0_i32_1 = arith.constant 0 : i32
    return %c0_i32, %c0_i32_0 : i32, i32
  }
  func.func @transform_5(%arg0: i32) -> (i32, i32) {
    %c0_i32 = arith.constant 0 : i32
    %c0_i32_0 = arith.constant 0 : i32
    return %arg0, %c0_i32 : i32, i32
  }
}

</mosaic_0001>

<llo_original>
// kernel: lstm_classifier_forward.1
$region0: #{lstm_classifier_forward.1}
  #allocation0 [shape = 'u32[]', space=smem, size = 0x4, offset = 0x4, fixed_abs, tag = 'smem constant byte address 0x4 - core index']
  #allocation1 [shape = 'u32[144,128]{1,0:T(1,128)}', space=vmem, size = 0x12000, scoped, tag = 'internal scratch']
  %s0 = inlined_call_operand.vmem [shape: f32[16,64], index: 0, kind: input, shape index: {}]
  %s1 = inlined_call_operand.vmem [shape: f32[64,384], index: 1, kind: input, shape index: {}]
  %s2 = inlined_call_operand.vmem [shape: f32[1,384], index: 2, kind: input, shape index: {}]
  %s3 = inlined_call_operand.vmem [shape: f32[128,12], index: 3, kind: input, shape index: {}]
  %s4 = inlined_call_operand.vmem [shape: f32[1,12], index: 4, kind: input, shape index: {}]
  %s5 = inlined_call_operand.vmem [shape: f32[16,12], index: 5, kind: output, shape index: {}]
  %s6 = sld [smem:[#allocation0]]
  $region30: #{lstm_classifier_forward.1} parent=0
    _
  %s8 = ssub.s32 1, %s6
  %s9 = scalar_select 0, %s8, %s6
  // Predicated region
  $region2: #{lstm_classifier_forward.1} parent=0 // pred_check
    _
  $region3: #{lstm_classifier_forward.1} parent=0 // pred_check_branch
    %11 = sbr.rel (0) target = $region5
  $region4: #{lstm_classifier_forward.1} parent=0 // pred_region
    _
  $region5: #{lstm_classifier_forward.1} parent=0 // pred_fallthru
    _
  // Predicated region
  $region6: #{lstm_classifier_forward.1} parent=0 // pred_check
    _
  $region7: #{lstm_classifier_forward.1} parent=0 // pred_check_branch
    %13 = sbr.rel (0) target = $region9
  $region8: #{lstm_classifier_forward.1} parent=0 // pred_region
    _
  $region9: #{lstm_classifier_forward.1} parent=0 // pred_fallthru
    _
  // Predicated region
  $region10: #{lstm_classifier_forward.1} parent=0 // pred_check
    _
  $region11: #{lstm_classifier_forward.1} parent=0 // pred_check_branch
    %15 = sbr.rel (0) target = $region13
  $region12: #{lstm_classifier_forward.1} parent=0 // pred_region
    _
  $region13: #{lstm_classifier_forward.1} parent=0 // pred_fallthru
    _
  // Predicated region
  $region14: #{lstm_classifier_forward.1} parent=0 // pred_check
    _
  $region15: #{lstm_classifier_forward.1} parent=0 // pred_check_branch
    %17 = sbr.rel (0) target = $region17
  $region16: #{lstm_classifier_forward.1} parent=0 // pred_region
    _
  $region17: #{lstm_classifier_forward.1} parent=0 // pred_fallthru
    _
  // Predicated region
  $region18: #{lstm_classifier_forward.1} parent=0 // pred_check
    _
  $region19: #{lstm_classifier_forward.1} parent=0 // pred_check_branch
    %19 = sbr.rel (0) target = $region21
  $region20: #{lstm_classifier_forward.1} parent=0 // pred_region
    _
  $region21: #{lstm_classifier_forward.1} parent=0 // pred_fallthru
    _
  %v20 = vld [vmem:[%s0] sm:$0xff]
  %v21 = vld [vmem:[%s0 + $0x8] sm:$0xff]
  %v22 = vld [vmem:[%s1] sm:$0xff]
  %v23 = vld [vmem:[%s1 + $0x8] sm:$0xff]
  %v24 = vld [vmem:[%s1 + $0x10] sm:$0xff]
  %v25 = vld [vmem:[%s1 + $0x18] sm:$0xff]
  %v26 = vld [vmem:[%s1 + $0x20] sm:$0xff]
  %v27 = vld [vmem:[%s1 + $0x28] sm:$0xff]
  %v28 = vld [vmem:[%s1 + $0x30] sm:$0xff]
  %v29 = vld [vmem:[%s1 + $0x38] sm:$0xff]
  %v30 = vld [vmem:[%s1 + $0x40] sm:$0xff]
  %v31 = vld [vmem:[%s1 + $0x48] sm:$0xff]
  %v32 = vld [vmem:[%s1 + $0x50] sm:$0xff]
  %v33 = vld [vmem:[%s1 + $0x58] sm:$0xff]
  %v34 = vld [vmem:[%s1 + $0x60] sm:$0xff]
  %v35 = vld [vmem:[%s1 + $0x68] sm:$0xff]
  %v36 = vld [vmem:[%s1 + $0x70] sm:$0xff]
  %v37 = vld [vmem:[%s1 + $0x78] sm:$0xff]
  %v38 = vld [vmem:[%s1 + $0x80] sm:$0xff]
  %v39 = vld [vmem:[%s1 + $0x88] sm:$0xff]
  %v40 = vld [vmem:[%s1 + $0x90] sm:$0xff]
  %v41 = vld [vmem:[%s1 + $0x98] sm:$0xff]
  %v42 = vld [vmem:[%s1 + $0xa0] sm:$0xff]
  %v43 = vld [vmem:[%s1 + $0xa8] sm:$0xff]
  %v44 = vld [vmem:[%s1 + $0xb0] sm:$0xff]
  %v45 = vld [vmem:[%s1 + $0xb8] sm:$0xff]
  %v46 = vld [vmem:[%s2] sm:$0x7]
  %v48 = vlaneseq
  %v49 = vshrl.u32 %v48, 7
  %v50 = vsub.s32 0, %v49
  %v51 = vrot.slane %v46, %v50
  %v52 = vlaneseq
  %v53 = vshrl.u32 %v52, 7
  %v54 = vsub.s32 1, %v53
  %v55 = vrot.slane %v46, %v54
  %v56 = vlaneseq
  %v57 = vshrl.u32 %v56, 7
  %v58 = vsub.s32 2, %v57
  %v59 = vrot.slane %v46, %v58
  %vm63 = vcmask 523264
  %v65 = vsel %vm63, %v20, 0
  %v68 = vsel %vm63, %v21, 0
  %70 = vmatprep.subr.mxu0 %v23
  %71 = vmatpush1.msra.mxu0 %v22
  %72 = vmatprep.subr.mxu0 %v26
  %73 = vmatpush1.msra.mxu0 %v25
  %74 = vmatprep.subr.mxu0 %v29
  %75 = vmatpush1.msra.mxu0 %v28
  %76 = vmatprep.subr.mxu0 %v32
  %77 = vmatpush1.msra.mxu0 %v31
  %78 = vmatprep.subr.mxu0 %v35
  %79 = vmatpush1.msra.mxu0 %v34
  %80 = vmatprep.subr.mxu0 %v38
  %81 = vmatpush1.msra.mxu0 %v37
  %82 = vmatprep.subr.mxu0 %v41
  %83 = vmatpush1.msra.mxu0 %v40
  %84 = vmatprep.subr.mxu0 %v44
  %85 = vmatpush1.msra.mxu0 %v43
  %86 = vmatprep.subr.mxu0 0.0
  %87 = vmatpush1.msra.mxu0 0.0
  %88 = vmatprep.subr.mxu0 0.0
  %89 = vmatpush1.msra.mxu0 0.0
  %90 = vmatprep.subr.mxu0 0.0
  %91 = vmatpush1.msra.mxu0 0.0
  %92 = vmatprep.subr.mxu0 0.0
  %93 = vmatpush1.msra.mxu0 0.0
  %94 = vmatprep.subr.mxu0 0.0
  %95 = vmatpush1.msra.mxu0 0.0
  %96 = vmatprep.subr.mxu0 0.0
  %97 = vmatpush1.msra.mxu0 0.0
  %98 = vmatprep.subr.mxu0 0.0
  %99 = vmatpush1.msra.mxu0 0.0
  %100 = vmatprep.subr.mxu0 0.0
  %101 = vmatpush1.msra.mxu0 0.0
  %102 = vmatprep.subr.mxu0 0.0
  %103 = vmatpush1.msra.mxu0 0.0
  %104 = vmatprep.subr.mxu0 0.0
  %105 = vmatpush1.msra.mxu0 0.0
  %106 = vmatprep.subr.mxu0 0.0
  %107 = vmatpush1.msra.mxu0 0.0
  %108 = vmatprep.subr.mxu0 0.0
  %109 = vmatpush1.msra.mxu0 0.0
  %110 = vmatprep.subr.mxu0 0.0
  %111 = vmatpush1.msra.mxu0 0.0
  %112 = vmatprep.subr.mxu0 0.0
  %113 = vmatpush1.msra.mxu0 0.0
  %114 = vmatprep.subr.mxu0 0.0
  %115 = vmatpush1.msra.mxu0 0.0
  %116 = vmatprep.subr.mxu0 0.0
  %117 = vmatpush1.msra.mxu0 0.0
  %118 = vmatprep.subr.mxu0 0.0
  %119 = vmatpush1.msra.mxu0 0.0
  %120 = vmatprep.subr.mxu0 0.0
  %121 = vmatpush1.msra.mxu0 0.0
  %122 = vmatprep.subr.mxu0 0.0
  %123 = vmatpush1.msra.mxu0 0.0
  %124 = vmatprep.subr.mxu0 0.0
  %125 = vmatpush1.msra.mxu0 0.0
  %126 = vmatprep.subr.mxu0 0.0
  %127 = vmatpush1.msra.mxu0 0.0
  %128 = vmatprep.subr.mxu0 0.0
  %129 = vmatpush1.msra.mxu0 0.0
  %130 = vmatprep.subr.mxu0 0.0
  %131 = vmatpush1.msra.mxu0 0.0
  %132 = vmatprep.subr.mxu0 0.0
  %133 = vmatpush1.msra.mxu0 0.0
  %134 = vmatprep.mubr.f32.mxu0 0.0
  %135 = vmatmul.mubr.f32.gmra.mrb[0].mxu0 %v65
  %v136 = vpop.f32.mrb[0].mxu0
  %v137 = vadd.f32 %v51, %v136
  %v138 = vpop.f32.mrb[0].mxu0
  %v139 = vadd.f32 %v55, %v138
  %140 = vmatprep.mubr.f32.mxu0 0.0
  %141 = vmatmul.mubr.f32.gmra.mrb[0].mxu0 %v68
  %v142 = vpop.f32.mrb[0].mxu0
  %v143 = vadd.f32 %v51, %v142
  %v144 = vpop.f32.mrb[0].mxu0
  %v145 = vadd.f32 %v55, %v144
  %146 = vdwg.mxu0
  %147 = vmatprep.subr.mxu0 0.0
  %148 = vmatpush1.msra.mxu0 %v24
  %149 = vmatprep.subr.mxu0 0.0
  %150 = vmatpush1.msra.mxu0 %v27
  %151 = vmatprep.subr.mxu0 0.0
  %152 = vmatpush1.msra.mxu0 %v30
  %153 = vmatprep.subr.mxu0 0.0
  %154 = vmatpush1.msra.mxu0 %v33
  %155 = vmatprep.subr.mxu0 0.0
  %156 = vmatpush1.msra.mxu0 %v36
  %157 = vmatprep.subr.mxu0 0.0
  %158 = vmatpush1.msra.mxu0 %v39
  %159 = vmatprep.subr.mxu0 0.0
  %160 = vmatpush1.msra.mxu0 %v42
  %161 = vmatprep.subr.mxu0 0.0
  %162 = vmatpush1.msra.mxu0 %v45
  %163 = vmatprep.subr.mxu0 0.0
  %164 = vmatpush1.msra.mxu0 0.0
  %165 = vmatprep.subr.mxu0 0.0
  %166 = vmatpush1.msra.mxu0 0.0
  %167 = vmatprep.subr.mxu0 0.0
  %168 = vmatpush1.msra.mxu0 0.0
  %169 = vmatprep.subr.mxu0 0.0
  %170 = vmatpush1.msra.mxu0 0.0
  %171 = vmatprep.subr.mxu0 0.0
  %172 = vmatpush1.msra.mxu0 0.0
  %173 = vmatprep.subr.mxu0 0.0
  %174 = vmatpush1.msra.mxu0 0.0
  %175 = vmatprep.subr.mxu0 0.0
  %176 = vmatpush1.msra.mxu0 0.0
  %177 = vmatprep.subr.mxu0 0.0
  %178 = vmatpush1.msra.mxu0 0.0
  %179 = vmatprep.subr.mxu0 0.0
  %180 = vmatpush1.msra.mxu0 0.0
  %181 = vmatprep.subr.mxu0 0.0
  %182 = vmatpush1.msra.mxu0 0.0
  %183 = vmatprep.subr.mxu0 0.0
  %184 = vmatpush1.msra.mxu0 0.0
  %185 = vmatprep.subr.mxu0 0.0
  %186 = vmatpush1.msra.mxu0 0.0
  %187 = vmatprep.subr.mxu0 0.0
  %188 = vmatpush1.msra.mxu0 0.0
  %189 = vmatprep.subr.mxu0 0.0
  %190 = vmatpush1.msra.mxu0 0.0
  %191 = vmatprep.subr.mxu0 0.0
  %192 = vmatpush1.msra.mxu0 0.0
  %193 = vmatprep.subr.mxu0 0.0
  %194 = vmatpush1.msra.mxu0 0.0
  %195 = vmatprep.subr.mxu0 0.0
  %196 = vmatpush1.msra.mxu0 0.0
  %197 = vmatprep.subr.mxu0 0.0
  %198 = vmatpush1.msra.mxu0 0.0
  %199 = vmatprep.subr.mxu0 0.0
  %200 = vmatpush1.msra.mxu0 0.0
  %201 = vmatprep.subr.mxu0 0.0
  %202 = vmatpush1.msra.mxu0 0.0
  %203 = vmatprep.subr.mxu0 0.0
  %204 = vmatpush1.msra.mxu0 0.0
  %205 = vmatprep.subr.mxu0 0.0
  %206 = vmatpush1.msra.mxu0 0.0
  %207 = vmatprep.subr.mxu0 0.0
  %208 = vmatpush1.msra.mxu0 0.0
  %209 = vmatprep.subr.mxu0 0.0
  %210 = vmatpush1.msra.mxu0 0.0
  %211 = vmatprep.mubr.f32.mxu0 0.0
  %212 = vmatmul.mubr.f32.gmra.mrb[0].mxu0 %v65
  %v213 = vpop.f32.mrb[0].mxu0
  %v214 = vadd.f32 %v59, %v213
  %v215 = vpop.f32.mrb[0].mxu0
  %216 = vmatprep.mubr.f32.mxu0 0.0
  %217 = vmatmul.mubr.f32.gmra.mrb[0].mxu0 %v68
  %v218 = vpop.f32.mrb[0].mxu0
  %v219 = vadd.f32 %v59, %v218
  %v220 = vpop.f32.mrb[0].mxu0
  %221 = vdwg.mxu0
  %v222 = vmul.f32 %v137, 0.5
  %v223 = vmul.f32 %v139, 0.5
  %v224 = vmul.f32 %v143, 0.5
  %v225 = vmul.f32 %v145, 0.5
  %v226 = vtanh.pop %v222
  %v227 = vtanh.pop %v223
  %v228 = vtanh.pop %v224
  %v229 = vtanh.pop %v225
  %v230 = vmul.f32 %v226, 0.5
  %v231 = vmul.f32 %v227, 0.5
  %v232 = vmul.f32 %v228, 0.5
  %v233 = vmul.f32 %v229, 0.5
  %v234 = vadd.f32 %v230, 0.5
  %v235 = vadd.f32 %v231, 0.5
  %v236 = vadd.f32 %v232, 0.5
  %v237 = vadd.f32 %v233, 0.5
  %v238 = vtanh.pop %v214
  %v239 = vtanh.pop %v219
  %v240 = vmul.f32 %v234, %v238
  %v241 = vmul.f32 %v236, %v239
  %v242 = vtanh.pop %v240
  %v243 = vtanh.pop %v241
  %v244 = vmul.f32 %v235, %v242
  %v245 = vmul.f32 %v237, %v243
  %v246 = vld [vmem:[%s3] sm:$0xff]
  %v247 = vld [vmem:[%s3 + $0x8] sm:$0xff]
  %v248 = vld [vmem:[%s3 + $0x10] sm:$0xff]
  %v249 = vld [vmem:[%s3 + $0x18] sm:$0xff]
  %v250 = vld [vmem:[%s3 + $0x20] sm:$0xff]
  %v251 = vld [vmem:[%s3 + $0x28] sm:$0xff]
  %v252 = vld [vmem:[%s3 + $0x30] sm:$0xff]
  %v253 = vld [vmem:[%s3 + $0x38] sm:$0xff]
  %v254 = vld [vmem:[%s3 + $0x40] sm:$0xff]
  %v255 = vld [vmem:[%s3 + $0x48] sm:$0xff]
  %v256 = vld [vmem:[%s3 + $0x50] sm:$0xff]
  %v257 = vld [vmem:[%s3 + $0x58] sm:$0xff]
  %v258 = vld [vmem:[%s3 + $0x60] sm:$0xff]
  %v259 = vld [vmem:[%s3 + $0x68] sm:$0xff]
  %v260 = vld [vmem:[%s3 + $0x70] sm:$0xff]
  %v261 = vld [vmem:[%s3 + $0x78] sm:$0xff]
  %v262 = vld [vmem:[%s4] sm:$0x1]
  %v264 = vlaneseq
  %v265 = vshrl.u32 %v264, 7
  %v266 = vsub.s32 0, %v265
  %v267 = vrot.slane %v262, %v266
  %269 = vmatprep.subr.mxu0 0.0
  %270 = vmatpush1.msra.mxu0 %v246
  %271 = vmatprep.subr.mxu0 0.0
  %272 = vmatpush1.msra.mxu0 %v247
  %273 = vmatprep.subr.mxu0 0.0
  %274 = vmatpush1.msra.mxu0 %v248
  %275 = vmatprep.subr.mxu0 0.0
  %276 = vmatpush1.msra.mxu0 %v249
  %277 = vmatprep.subr.mxu0 0.0
  %278 = vmatpush1.msra.mxu0 %v250
  %279 = vmatprep.subr.mxu0 0.0
  %280 = vmatpush1.msra.mxu0 %v251
  %281 = vmatprep.subr.mxu0 0.0
  %282 = vmatpush1.msra.mxu0 %v252
  %283 = vmatprep.subr.mxu0 0.0
  %284 = vmatpush1.msra.mxu0 %v253
  %285 = vmatprep.subr.mxu0 0.0
  %286 = vmatpush1.msra.mxu0 %v254
  %287 = vmatprep.subr.mxu0 0.0
  %288 = vmatpush1.msra.mxu0 %v255
  %289 = vmatprep.subr.mxu0 0.0
  %290 = vmatpush1.msra.mxu0 %v256
  %291 = vmatprep.subr.mxu0 0.0
  %292 = vmatpush1.msra.mxu0 %v257
  %293 = vmatprep.subr.mxu0 0.0
  %294 = vmatpush1.msra.mxu0 %v258
  %295 = vmatprep.subr.mxu0 0.0
  %296 = vmatpush1.msra.mxu0 %v259
  %297 = vmatprep.subr.mxu0 0.0
  %298 = vmatpush1.msra.mxu0 %v260
  %299 = vmatprep.subr.mxu0 0.0
  %300 = vmatpush1.msra.mxu0 %v261
  %301 = vmatprep.subr.mxu0 0.0
  %302 = vmatpush1.msra.mxu0 0.0
  %303 = vmatprep.subr.mxu0 0.0
  %304 = vmatpush1.msra.mxu0 0.0
  %305 = vmatprep.subr.mxu0 0.0
  %306 = vmatpush1.msra.mxu0 0.0
  %307 = vmatprep.subr.mxu0 0.0
  %308 = vmatpush1.msra.mxu0 0.0
  %309 = vmatprep.subr.mxu0 0.0
  %310 = vmatpush1.msra.mxu0 0.0
  %311 = vmatprep.subr.mxu0 0.0
  %312 = vmatpush1.msra.mxu0 0.0
  %313 = vmatprep.subr.mxu0 0.0
  %314 = vmatpush1.msra.mxu0 0.0
  %315 = vmatprep.subr.mxu0 0.0
  %316 = vmatpush1.msra.mxu0 0.0
  %317 = vmatprep.subr.mxu0 0.0
  %318 = vmatpush1.msra.mxu0 0.0
  %319 = vmatprep.subr.mxu0 0.0
  %320 = vmatpush1.msra.mxu0 0.0
  %321 = vmatprep.subr.mxu0 0.0
  %322 = vmatpush1.msra.mxu0 0.0
  %323 = vmatprep.subr.mxu0 0.0
  %324 = vmatpush1.msra.mxu0 0.0
  %325 = vmatprep.subr.mxu0 0.0
  %326 = vmatpush1.msra.mxu0 0.0
  %327 = vmatprep.subr.mxu0 0.0
  %328 = vmatpush1.msra.mxu0 0.0
  %329 = vmatprep.subr.mxu0 0.0
  %330 = vmatpush1.msra.mxu0 0.0
  %331 = vmatprep.subr.mxu0 0.0
  %332 = vmatpush1.msra.mxu0 0.0
  %333 = vmatprep.mubr.f32.mxu0 0.0
  %334 = vmatmul.mubr.f32.gmra.mrb[0].mxu0 %v244
  %v335 = vpop.f32.mrb[0].mxu0
  %v336 = vadd.f32 %v267, %v335
  %v337 = vpop.f32.mrb[0].mxu0
  %338 = vmatprep.mubr.f32.mxu0 0.0
  %339 = vmatmul.mubr.f32.gmra.mrb[0].mxu0 %v245
  %v340 = vpop.f32.mrb[0].mxu0
  %v341 = vadd.f32 %v267, %v340
  %v342 = vpop.f32.mrb[0].mxu0
  %343 = vdwg.mxu0
  %vm344 = vcmask 97280
  %345 = vst.msk [vmem:[%s5] sm:$0xff] %vm344, %v336
  %346 = vst.msk [vmem:[%s5 + $0x8] sm:$0xff] %vm344, %v341
  // Predicated region
  $region22: #{lstm_classifier_forward.1} parent=0 // pred_check
    _
  $region23: #{lstm_classifier_forward.1} parent=0 // pred_check_branch
    %348 = sbr.rel (0) target = $region25
  $region24: #{lstm_classifier_forward.1} parent=0 // pred_region
    _
  $region25: #{lstm_classifier_forward.1} parent=0 // pred_fallthru
    _
  // Predicated region
  $region26: #{lstm_classifier_forward.1} parent=0 // pred_check
    _
  $region27: #{lstm_classifier_forward.1} parent=0 // pred_check_branch
    %350 = sbr.rel (0) target = $region29
  $region28: #{lstm_classifier_forward.1} parent=0 // pred_region
    _
  $region29: #{lstm_classifier_forward.1} parent=0 // pred_fallthru
    _

</llo_original>
